<compile_context>
chip_gen: v7x
topology: tpu7x:2x2x1
jax: 0.10.0
libtpu: 0.0.40
codegen_flags: <defaults>
</compile_context>

<pallas_src>
import functools

import jax
import jax.numpy as jnp
from jax.experimental import pallas as pl
from jax.experimental.pallas import tpu as pltpu

IN_FEATURES = 784
HIDDEN = 100            # PyTorch module default hidden_layer_size
HIDDEN_PAD = 128        # lane-aligned padded hidden width (zero padding is exact)
OUT_FEATURES = 10
OUT_PAD = 16            # small padded output block; wrapper slices back to 10
N_HIDDEN_LAYERS = 2     # module default
MAX_TILE = 1024         # rows per grid step for large batches
MIN_TILE = 256


def _round_up(n, m):
    return ((n + m - 1) // m) * m


def mlp_kernel(x_ref,
               w0_ref, b0_ref,      # inputLayer: 784 -> HIDDEN_PAD
               w1_ref, b1_ref,      # hidden Linear 1 (+ ReLU)
               w2_ref, b2_ref,      # hidden Linear 2 (+ ReLU)
               w3_ref, b3_ref,      # finalLayer: HIDDEN_PAD -> OUT_PAD
               o_ref):
    bf16 = jnp.bfloat16

    # x arrives as the original f32 rows; cast to bf16 here (no wrapper repack).
    x = x_ref[...].astype(bf16)                                  # (tile_b, 784)

    # inputLayer (no activation after it, matching the Sequential ordering)
    h = jnp.dot(x, w0_ref[...], preferred_element_type=jnp.float32) + b0_ref[...]

    # hidden layer 1: Linear + ReLU (bf16 matmul operands, f32 accumulate)
    h = jnp.dot(h.astype(bf16), w1_ref[...],
                preferred_element_type=jnp.float32) + b1_ref[...]
    h = jnp.maximum(h, 0.0)

    # hidden layer 2: Linear + ReLU
    h = jnp.dot(h.astype(bf16), w2_ref[...],
                preferred_element_type=jnp.float32) + b2_ref[...]
    h = jnp.maximum(h, 0.0)

    # finalLayer (padded to 16 output columns), then Identity output activation
    out = jnp.dot(h.astype(bf16), w3_ref[...],
                  preferred_element_type=jnp.float32) + b3_ref[...]
    o_ref[...] = out.astype(o_ref.dtype)


def pack_params(params):
    """One-time packing: bf16 weights / f32 biases, zero-padded to aligned shapes.

    Call once and reuse the result across forward calls (weights are NOT
    repacked per call)."""
    bf16, f32 = jnp.bfloat16, jnp.float32
    (w0, b0), (w1, b1), (w2, b2), (w3, b3) = params

    def pad_w(w, rows, cols):
        buf = jnp.zeros((rows, cols), bf16)
        return buf.at[:w.shape[0], :w.shape[1]].set(w.astype(bf16))

    def pad_b(b, cols):
        buf = jnp.zeros((1, cols), f32)
        return buf.at[:, :b.shape[1]].set(b.astype(f32))

    return (pad_w(w0, IN_FEATURES, HIDDEN_PAD), pad_b(b0, HIDDEN_PAD),
            pad_w(w1, HIDDEN_PAD, HIDDEN_PAD),  pad_b(b1, HIDDEN_PAD),
            pad_w(w2, HIDDEN_PAD, HIDDEN_PAD),  pad_b(b2, HIDDEN_PAD),
            pad_w(w3, HIDDEN_PAD, OUT_PAD),     pad_b(b3, OUT_PAD))


def _batch_layout(b):
    """Pick (tile_b, padded_batch).  Small batches: single step, no padding.
    Large batches: 256..1024-row tiles with >= ~4 grid steps (>=2 per v7x TC)."""
    if b <= MAX_TILE:
        return b, b
    tile = max(MIN_TILE, min(MAX_TILE, _round_up(-(-b // 4), MIN_TILE)))
    return tile, _round_up(b, tile)


def _mlp_forward(x, packed):
    """x: (B, 784) float32.  packed: output of pack_params()."""
    B = x.shape[0]
    tile_b, b_padded = _batch_layout(B)
    if b_padded != B:
        # Only hit when B > MAX_TILE and ragged w.r.t. the tile; padded rows are
        # discarded by the [:B] slice below.
        x = jnp.pad(x, ((0, b_padded - B), (0, 0)))

    def w_spec(shape):
        # Constant index_map: weights/biases stay VMEM-resident across the grid.
        return pl.BlockSpec(shape, lambda i: (0, 0))

    flops = 2 * b_padded * (IN_FEATURES * HIDDEN_PAD
                            + N_HIDDEN_LAYERS * HIDDEN_PAD * HIDDEN_PAD
                            + HIDDEN_PAD * OUT_PAD)
    bytes_accessed = (b_padded * IN_FEATURES * 4            # x stream (f32)
                      + b_padded * OUT_PAD * 4              # output stream (f32)
                      + sum(int(a.size) * a.dtype.itemsize for a in packed))

    out = pl.pallas_call(
        mlp_kernel,
        out_shape=jax.ShapeDtypeStruct((b_padded, OUT_PAD), jnp.float32),
        grid=(b_padded // tile_b,),
        in_specs=[
            pl.BlockSpec((tile_b, IN_FEATURES), lambda i: (i, 0)),
            w_spec((IN_FEATURES, HIDDEN_PAD)), w_spec((1, HIDDEN_PAD)),
            w_spec((HIDDEN_PAD, HIDDEN_PAD)),  w_spec((1, HIDDEN_PAD)),
            w_spec((HIDDEN_PAD, HIDDEN_PAD)),  w_spec((1, HIDDEN_PAD)),
            w_spec((HIDDEN_PAD, OUT_PAD)),     w_spec((1, OUT_PAD)),
        ],
        out_specs=pl.BlockSpec((tile_b, OUT_PAD), lambda i: (i, 0)),
        compiler_params=pltpu.CompilerParams(
            dimension_semantics=("parallel",)),
        cost_estimate=pl.CostEstimate(flops=flops, transcendentals=0,
                                      bytes_accessed=bytes_accessed),
    )(x, *packed)

    return out[:B, :OUT_FEATURES]


# Jitted entry point: the final slice (and any ragged-batch pad) fuses with the
# kernel call instead of dispatching as separate eager ops.
mlp_forward = jax.jit(_mlp_forward)


def init_params(key):
    """Deterministic synthetic params. W stored as (in, out); b as (1, out)."""
    dims = [(IN_FEATURES, HIDDEN), (HIDDEN, HIDDEN), (HIDDEN, HIDDEN),
            (HIDDEN, OUT_FEATURES)]
    params = []
    for d_in, d_out in dims:
        key, kw, kb = jax.random.split(key, 3)
        bound = 1.0 / jnp.sqrt(d_in)   # matches torch.nn.Linear init range
        w = jax.random.uniform(kw, (d_in, d_out), jnp.float32, -bound, bound)
        b = jax.random.uniform(kb, (1, d_out), jnp.float32, -bound, bound)
        params.append((w, b))
    return params


def mlp_reference(x, params):
    """Plain-JAX reference using the same bf16-operand / f32-accumulate recipe."""
    # TODO(synk): strict float32 parity with the PyTorch model would require f32
    # matmuls; bf16 operands are used for MXU throughput and mirrored here.
    bf16 = jnp.bfloat16
    (w0, b0), (w1, b1), (w2, b2), (w3, b3) = params
    h = jnp.dot(x.astype(bf16), w0.astype(bf16),
                preferred_element_type=jnp.float32) + b0
    h = jnp.maximum(jnp.dot(h.astype(bf16), w1.astype(bf16),
                            preferred_element_type=jnp.float32) + b1, 0.0)
    h = jnp.maximum(jnp.dot(h.astype(bf16), w2.astype(bf16),
                            preferred_element_type=jnp.float32) + b2, 0.0)
    return jnp.dot(h.astype(bf16), w3.astype(bf16),
                   preferred_element_type=jnp.float32) + b3


if __name__ == "__main__":
    key = jax.random.PRNGKey(0)
    key, kx = jax.random.split(key)

    B = 20   # small, deliberately not 8/128-aligned: tile == full batch, no padding
    x = jax.random.normal(kx, (B, IN_FEATURES), jnp.float32)
    params = init_params(key)
    packed = pack_params(params)          # one-time weight packing

    out = jax.block_until_ready(mlp_forward(x, packed))
    ref = mlp_reference(x, params)

    assert out.shape == (B, OUT_FEATURES), out.shape
    assert jnp.allclose(out, ref, atol=2e-2, rtol=2e-2), \
        float(jnp.max(jnp.abs(out - ref)))

    print("KERNEL_OK")
</pallas_src>

<mosaic_0001>
module attributes {stable_mosaic.version = 11 : i64} {
  func.func @mlp_kernel(%arg0: i32, %arg1: memref<20x784xf32, #tpu.memory_space<vmem>>, %arg2: memref<784x128xbf16, #tpu.memory_space<vmem>>, %arg3: memref<1x128xf32, #tpu.memory_space<vmem>>, %arg4: memref<128x128xbf16, #tpu.memory_space<vmem>>, %arg5: memref<1x128xf32, #tpu.memory_space<vmem>>, %arg6: memref<128x128xbf16, #tpu.memory_space<vmem>>, %arg7: memref<1x128xf32, #tpu.memory_space<vmem>>, %arg8: memref<128x16xbf16, #tpu.memory_space<vmem>>, %arg9: memref<1x16xf32, #tpu.memory_space<vmem>>, %arg10: memref<20x16xf32, #tpu.memory_space<vmem>>) attributes {dimension_semantics = [#tpu.dimension_semantics<parallel>], iteration_bounds = array<i64: 1>, scalar_prefetch = 0 : i64, scratch_operands = 0 : i64, tpu.core_type = #tpu.core_type<tc>, window_params = [{transform_indices = @transform_0, window_bounds = array<i64: 20, 784>}, {pipeline_mode = #tpu.pipeline_mode<synchronous>, transform_indices = @transform_1, window_bounds = array<i64: 784, 128>}, {pipeline_mode = #tpu.pipeline_mode<synchronous>, transform_indices = @transform_2, window_bounds = array<i64: 1, 128>}, {pipeline_mode = #tpu.pipeline_mode<synchronous>, transform_indices = @transform_3, window_bounds = array<i64: 128, 128>}, {pipeline_mode = #tpu.pipeline_mode<synchronous>, transform_indices = @transform_4, window_bounds = array<i64: 1, 128>}, {pipeline_mode = #tpu.pipeline_mode<synchronous>, transform_indices = @transform_5, window_bounds = array<i64: 128, 128>}, {pipeline_mode = #tpu.pipeline_mode<synchronous>, transform_indices = @transform_6, window_bounds = array<i64: 1, 128>}, {pipeline_mode = #tpu.pipeline_mode<synchronous>, transform_indices = @transform_7, window_bounds = array<i64: 128, 16>}, {pipeline_mode = #tpu.pipeline_mode<synchronous>, transform_indices = @transform_8, window_bounds = array<i64: 1, 16>}, {transform_indices = @transform_9, window_bounds = array<i64: 20, 16>}]} {
    %c0 = arith.constant 0 : index
    %c0_0 = arith.constant 0 : index
    %0 = vector.load %arg1[%c0, %c0_0] : memref<20x784xf32, #tpu.memory_space<vmem>>, vector<20x784xf32>
    %1 = arith.truncf %0 : vector<20x784xf32> to vector<20x784xbf16>
    %c0_1 = arith.constant 0 : index
    %c0_2 = arith.constant 0 : index
    %2 = vector.load %arg2[%c0_1, %c0_2] : memref<784x128xbf16, #tpu.memory_space<vmem>>, vector<784x128xbf16>
    %cst = arith.constant dense<0.000000e+00> : vector<20x128xf32>
    %3 = tpu.matmul %1, %2, %cst {dimension_numbers = #tpu.dot_dimension_numbers<[1], [0], [0], [1], [0, 0, 1, 1], [], []>} : vector<20x784xbf16>, vector<784x128xbf16>, vector<20x128xf32> -> vector<20x128xf32>
    %c0_3 = arith.constant 0 : index
    %c0_4 = arith.constant 0 : index
    %4 = vector.load %arg3[%c0_3, %c0_4] : memref<1x128xf32, #tpu.memory_space<vmem>>, vector<1x128xf32>
    %5 = vector.broadcast %4 : vector<1x128xf32> to vector<20x128xf32>
    %6 = arith.addf %3, %5 : vector<20x128xf32>
    %7 = arith.truncf %6 : vector<20x128xf32> to vector<20x128xbf16>
    %c0_5 = arith.constant 0 : index
    %c0_6 = arith.constant 0 : index
    %8 = vector.load %arg4[%c0_5, %c0_6] : memref<128x128xbf16, #tpu.memory_space<vmem>>, vector<128x128xbf16>
    %cst_7 = arith.constant dense<0.000000e+00> : vector<20x128xf32>
    %9 = tpu.matmul %7, %8, %cst_7 {dimension_numbers = #tpu.dot_dimension_numbers<[1], [0], [0], [1], [0, 0, 1, 1], [], []>} : vector<20x128xbf16>, vector<128x128xbf16>, vector<20x128xf32> -> vector<20x128xf32>
    %c0_8 = arith.constant 0 : index
    %c0_9 = arith.constant 0 : index
    %10 = vector.load %arg5[%c0_8, %c0_9] : memref<1x128xf32, #tpu.memory_space<vmem>>, vector<1x128xf32>
    %11 = vector.broadcast %10 : vector<1x128xf32> to vector<20x128xf32>
    %12 = arith.addf %9, %11 : vector<20x128xf32>
    %cst_10 = arith.constant 0.000000e+00 : f32
    %13 = vector.broadcast %cst_10 : f32 to vector<20x128xf32>
    %14 = arith.maximumf %12, %13 : vector<20x128xf32>
    %15 = arith.truncf %14 : vector<20x128xf32> to vector<20x128xbf16>
    %c0_11 = arith.constant 0 : index
    %c0_12 = arith.constant 0 : index
    %16 = vector.load %arg6[%c0_11, %c0_12] : memref<128x128xbf16, #tpu.memory_space<vmem>>, vector<128x128xbf16>
    %cst_13 = arith.constant dense<0.000000e+00> : vector<20x128xf32>
    %17 = tpu.matmul %15, %16, %cst_13 {dimension_numbers = #tpu.dot_dimension_numbers<[1], [0], [0], [1], [0, 0, 1, 1], [], []>} : vector<20x128xbf16>, vector<128x128xbf16>, vector<20x128xf32> -> vector<20x128xf32>
    %c0_14 = arith.constant 0 : index
    %c0_15 = arith.constant 0 : index
    %18 = vector.load %arg7[%c0_14, %c0_15] : memref<1x128xf32, #tpu.memory_space<vmem>>, vector<1x128xf32>
    %19 = vector.broadcast %18 : vector<1x128xf32> to vector<20x128xf32>
    %20 = arith.addf %17, %19 : vector<20x128xf32>
    %cst_16 = arith.constant 0.000000e+00 : f32
    %21 = vector.broadcast %cst_16 : f32 to vector<20x128xf32>
    %22 = arith.maximumf %20, %21 : vector<20x128xf32>
    %23 = arith.truncf %22 : vector<20x128xf32> to vector<20x128xbf16>
    %c0_17 = arith.constant 0 : index
    %c0_18 = arith.constant 0 : index
    %24 = vector.load %arg8[%c0_17, %c0_18] : memref<128x16xbf16, #tpu.memory_space<vmem>>, vector<128x16xbf16>
    %cst_19 = arith.constant dense<0.000000e+00> : vector<20x16xf32>
    %25 = tpu.matmul %23, %24, %cst_19 {dimension_numbers = #tpu.dot_dimension_numbers<[1], [0], [0], [1], [0, 0, 1, 1], [], []>} : vector<20x128xbf16>, vector<128x16xbf16>, vector<20x16xf32> -> vector<20x16xf32>
    %c0_20 = arith.constant 0 : index
    %c0_21 = arith.constant 0 : index
    %26 = vector.load %arg9[%c0_20, %c0_21] : memref<1x16xf32, #tpu.memory_space<vmem>>, vector<1x16xf32>
    %27 = vector.broadcast %26 : vector<1x16xf32> to vector<20x16xf32>
    %28 = arith.addf %25, %27 : vector<20x16xf32>
    %c0_22 = arith.constant 0 : index
    %c0_23 = arith.constant 0 : index
    %29 = vector.load %arg10[%c0_22, %c0_23] : memref<20x16xf32, #tpu.memory_space<vmem>>, vector<20x16xf32>
    tpu.vector_store %arg10[%c0_22, %c0_23], %28 {strides = array<i32>} : memref<20x16xf32, #tpu.memory_space<vmem>>, vector<20x16xf32>,
    return
  }
  func.func @transform_0(%arg0: i32) -> (i32, i32) {
    %c0_i32 = arith.constant 0 : i32
    %c0_i32_0 = arith.constant 0 : i32
    return %arg0, %c0_i32 : i32, i32
  }
  func.func @transform_1(%arg0: i32) -> (i32, i32) {
    %c0_i32 = arith.constant 0 : i32
    %c0_i32_0 = arith.constant 0 : i32
    %c0_i32_1 = arith.constant 0 : i32
    return %c0_i32, %c0_i32_0 : i32, i32
  }
  func.func @transform_2(%arg0: i32) -> (i32, i32) {
    %c0_i32 = arith.constant 0 : i32
    %c0_i32_0 = arith.constant 0 : i32
    %c0_i32_1 = arith.constant 0 : i32
    return %c0_i32, %c0_i32_0 : i32, i32
  }
  func.func @transform_3(%arg0: i32) -> (i32, i32) {
    %c0_i32 = arith.constant 0 : i32
    %c0_i32_0 = arith.constant 0 : i32
    %c0_i32_1 = arith.constant 0 : i32
    return %c0_i32, %c0_i32_0 : i32, i32
  }
  func.func @transform_4(%arg0: i32) -> (i32, i32) {
    %c0_i32 = arith.constant 0 : i32
    %c0_i32_0 = arith.constant 0 : i32
    %c0_i32_1 = arith.constant 0 : i32
    return %c0_i32, %c0_i32_0 : i32, i32
  }
  func.func @transform_5(%arg0: i32) -> (i32, i32) {
    %c0_i32 = arith.constant 0 : i32
    %c0_i32_0 = arith.constant 0 : i32
    %c0_i32_1 = arith.constant 0 : i32
    return %c0_i32, %c0_i32_0 : i32, i32
  }
  func.func @transform_6(%arg0: i32) -> (i32, i32) {
    %c0_i32 = arith.constant 0 : i32
    %c0_i32_0 = arith.constant 0 : i32
    %c0_i32_1 = arith.constant 0 : i32
    return %c0_i32, %c0_i32_0 : i32, i32
  }
  func.func @transform_7(%arg0: i32) -> (i32, i32) {
    %c0_i32 = arith.constant 0 : i32
    %c0_i32_0 = arith.constant 0 : i32
    %c0_i32_1 = arith.constant 0 : i32
    return %c0_i32, %c0_i32_0 : i32, i32
  }
  func.func @transform_8(%arg0: i32) -> (i32, i32) {
    %c0_i32 = arith.constant 0 : i32
    %c0_i32_0 = arith.constant 0 : i32
    %c0_i32_1 = arith.constant 0 : i32
    return %c0_i32, %c0_i32_0 : i32, i32
  }
  func.func @transform_9(%arg0: i32) -> (i32, i32) {
    %c0_i32 = arith.constant 0 : i32
    %c0_i32_0 = arith.constant 0 : i32
    return %arg0, %c0_i32 : i32, i32
  }
}

</mosaic_0001>

<llo_original>
// kernel: _mlp_forward.1
$region0: #{_mlp_forward.1}
  #allocation0 [shape = 'u32[]', space=smem, size = 0x4, offset = 0x4, fixed_abs, tag = 'smem constant byte address 0x4 - core index']
  #allocation1 [shape = 'u32[144,128]{1,0:T(1,128)}', space=vmem, size = 0x12000, scoped, tag = 'internal scratch']
  %s0 = inlined_call_operand.hbm [shape: f32[20,784], index: 0, kind: input, shape index: {}]
  %s1 = inlined_call_operand.hbm [shape: bf16[784,128], index: 1, kind: input, shape index: {}]
  %s2 = inlined_call_operand.vmem [shape: f32[1,128], index: 2, kind: input, shape index: {}]
  %s3 = inlined_call_operand.vmem [shape: bf16[128,128], index: 3, kind: input, shape index: {}]
  %s4 = inlined_call_operand.vmem [shape: f32[1,128], index: 4, kind: input, shape index: {}]
  %s5 = inlined_call_operand.hbm [shape: bf16[128,128], index: 5, kind: input, shape index: {}]
  %s6 = inlined_call_operand.vmem [shape: f32[1,128], index: 6, kind: input, shape index: {}]
  %s7 = inlined_call_operand.vmem [shape: bf16[128,16], index: 7, kind: input, shape index: {}]
  %s8 = inlined_call_operand.vmem [shape: f32[1,16], index: 8, kind: input, shape index: {}]
  %s9 = inlined_call_operand.vmem [shape: f32[20,16], index: 9, kind: output, shape index: {}]
  %s10 = sld [smem:[#allocation0]]
  $region58: #{_mlp_forward.1} parent=0
    _
  %s12 = ssub.s32 1, %s10
  %s13 = scalar_select 0, %s12, %s10
  $region1: #{_mlp_forward.1} parent=0
    #allocation2 [shape = 'u8[86016]{0}', space=vmem, size = 0x15000, scoped, tag = 'input window, operand 0, single buffered']
    #allocation3 [shape = 's32[1]{0}', space=sflag, size = 0x4, scoped, tag = 'scoped memory for _mlp_forward.1']
    #allocation4 [shape = 'u8[200704]{0}', space=vmem, size = 0x31000, scoped, tag = 'input window, operand 1, single buffered']
    #allocation5 [shape = 's32[1]{0}', space=sflag, size = 0x4, scoped, tag = 'scoped memory for _mlp_forward.1']
    #allocation6 [shape = 'u8[32768]{0}', space=vmem, size = 0x8000, scoped, tag = 'input window, operand 5, single buffered']
    %14 = vsyncpa [#allocation3], 0
    %15 = vsyncpa [#allocation5], 0
    // Predicated region
    $region2: #{_mlp_forward.1} parent=1 // pred_check
      _
    $region3: #{_mlp_forward.1} parent=1 // pred_check_branch
      %17 = sbr.rel (0) target = $region5
    $region4: #{_mlp_forward.1} parent=1 // pred_region
      %s19 = ssub.s32 2688, 2688
      %20 = vsyncadd [#allocation3], %s19
      %s21 = sshll.u32 [#allocation2], 4
      %s22 = int_to_ptr.vmem [resolvable:$true] %s21
      %27 = dma.hbm_to_vmem [thread:$0]  %s0, 2688, %s22, [#allocation3], 896, 896, 56
    $region5: #{_mlp_forward.1} parent=1 // pred_fallthru
      _
    // Predicated region
    $region6: #{_mlp_forward.1} parent=1 // pred_check
      _
    $region7: #{_mlp_forward.1} parent=1 // pred_check_branch
      %29 = sbr.rel (0) target = $region9
    $region8: #{_mlp_forward.1} parent=1 // pred_region
      %s31 = ssub.s32 6272, 6272
      %32 = vsyncadd [#allocation5], %s31
      %s33 = sshll.u32 [#allocation4], 4
      %s34 = int_to_ptr.vmem [resolvable:$true] %s33
      %39 = dma.hbm_to_vmem [thread:$0]  %s1, 6272, %s34, [#allocation5], 64, 64, 4
    $region9: #{_mlp_forward.1} parent=1 // pred_fallthru
      _
    // Predicated region
    $region10: #{_mlp_forward.1} parent=1 // pred_check
      _
    $region11: #{_mlp_forward.1} parent=1 // pred_check_branch
      %41 = sbr.rel (0) target = $region13
    $region12: #{_mlp_forward.1} parent=1 // pred_region
      _
    $region13: #{_mlp_forward.1} parent=1 // pred_fallthru
      _
    // Predicated region
    $region14: #{_mlp_forward.1} parent=1 // pred_check
      _
    $region15: #{_mlp_forward.1} parent=1 // pred_check_branch
      %43 = sbr.rel (0) target = $region17
    $region16: #{_mlp_forward.1} parent=1 // pred_region
      _
    $region17: #{_mlp_forward.1} parent=1 // pred_fallthru
      _
    // Predicated region
    $region18: #{_mlp_forward.1} parent=1 // pred_check
      _
    $region19: #{_mlp_forward.1} parent=1 // pred_check_branch
      %45 = sbr.rel (0) target = $region21
    $region20: #{_mlp_forward.1} parent=1 // pred_region
      _
    $region21: #{_mlp_forward.1} parent=1 // pred_fallthru
      _
    // Predicated region
    $region22: #{_mlp_forward.1} parent=1 // pred_check
      _
    $region23: #{_mlp_forward.1} parent=1 // pred_check_branch
      %47 = sbr.rel (0) target = $region25
    $region24: #{_mlp_forward.1} parent=1 // pred_region
      %s49 = ssub.s32 1024, 1024
      %50 = vsyncadd [#allocation5], %s49
      %s51 = sshll.u32 [#allocation6], 4
      %s52 = int_to_ptr.vmem [resolvable:$true] %s51
      %57 = dma.hbm_to_vmem [thread:$0]  %s5, 1024, %s52, [#allocation5], 64, 64, 4
    $region25: #{_mlp_forward.1} parent=1 // pred_fallthru
      _
    // Predicated region
    $region26: #{_mlp_forward.1} parent=1 // pred_check
      _
    $region27: #{_mlp_forward.1} parent=1 // pred_check_branch
      %59 = sbr.rel (0) target = $region29
    $region28: #{_mlp_forward.1} parent=1 // pred_region
      _
    $region29: #{_mlp_forward.1} parent=1 // pred_fallthru
      _
    // Predicated region
    $region30: #{_mlp_forward.1} parent=1 // pred_check
      _
    $region31: #{_mlp_forward.1} parent=1 // pred_check_branch
      %61 = sbr.rel (0) target = $region33
    $region32: #{_mlp_forward.1} parent=1 // pred_region
      _
    $region33: #{_mlp_forward.1} parent=1 // pred_fallthru
      _
    // Predicated region
    $region34: #{_mlp_forward.1} parent=1 // pred_check
      _
    $region35: #{_mlp_forward.1} parent=1 // pred_check_branch
      %63 = sbr.rel (0) target = $region37
    $region36: #{_mlp_forward.1} parent=1 // pred_region
      _
    $region37: #{_mlp_forward.1} parent=1 // pred_fallthru
      _
    // Predicated region
    $region38: #{_mlp_forward.1} parent=1 // pred_check
      _
    $region39: #{_mlp_forward.1} parent=1 // pred_check_branch
      %65 = sbr.rel (0) target = $region41
    $region40: #{_mlp_forward.1} parent=1 // pred_region
      %66 = dma.done [#allocation3], 2688
    $region41: #{_mlp_forward.1} parent=1 // pred_fallthru
      _
    // Predicated region
    $region42: #{_mlp_forward.1} parent=1 // pred_check
      _
    $region43: #{_mlp_forward.1} parent=1 // pred_check_branch
      %68 = sbr.rel (0) target = $region45
    $region44: #{_mlp_forward.1} parent=1 // pred_region
      %69 = dma.done [#allocation5], 6272
    $region45: #{_mlp_forward.1} parent=1 // pred_fallthru
      _
    // Predicated region
    $region46: #{_mlp_forward.1} parent=1 // pred_check
      _
    $region47: #{_mlp_forward.1} parent=1 // pred_check_branch
      %71 = sbr.rel (0) target = $region49
    $region48: #{_mlp_forward.1} parent=1 // pred_region
      %72 = dma.done [#allocation5], 1024
    $region49: #{_mlp_forward.1} parent=1 // pred_fallthru
      _
    %v74 = vld [vmem:[#allocation2] sm:$0xff]
    %v75 = vld [vmem:[#allocation2 + $0x8] sm:$0xff]
    %v76 = vld [vmem:[#allocation2 + $0x10] sm:$0xff]
    %v77 = vld [vmem:[#allocation2 + $0x18] sm:$0xff]
    %v78 = vld [vmem:[#allocation2 + $0x20] sm:$0xff]
    %v79 = vld [vmem:[#allocation2 + $0x28] sm:$0xff]
    %v80 = vld [vmem:[#allocation2 + $0x30] sm:$0xff]
    %v81 = vld [vmem:[#allocation2 + $0x38] sm:$0xff]
    %v82 = vld [vmem:[#allocation2 + $0x40] sm:$0xff]
    %v83 = vld [vmem:[#allocation2 + $0x48] sm:$0xff]
    %v84 = vld [vmem:[#allocation2 + $0x50] sm:$0xff]
    %v85 = vld [vmem:[#allocation2 + $0x58] sm:$0xff]
    %v86 = vld [vmem:[#allocation2 + $0x60] sm:$0xff]
    %v87 = vld [vmem:[#allocation2 + $0x68] sm:$0xff]
    %v88 = vld [vmem:[#allocation2 + $0x70] sm:$0xf]
    %v89 = vld [vmem:[#allocation2 + $0x78] sm:$0xf]
    %v90 = vld [vmem:[#allocation2 + $0x80] sm:$0xf]
    %v91 = vld [vmem:[#allocation2 + $0x88] sm:$0xf]
    %v92 = vld [vmem:[#allocation2 + $0x90] sm:$0xf]
    %v93 = vld [vmem:[#allocation2 + $0x98] sm:$0xf]
    %v94 = vld [vmem:[#allocation2 + $0xa0] sm:$0xf]
    %v95 = vpack.c.bf16 %v81, %v74
    %v96 = vpack.c.bf16 %v82, %v75
    %v97 = vpack.c.bf16 %v83, %v76
    %v98 = vpack.c.bf16 %v84, %v77
    %v99 = vpack.c.bf16 %v85, %v78
    %v100 = vpack.c.bf16 %v86, %v79
    %v101 = vpack.c.bf16 %v87, %v80
    %v102 = vpack.c.bf16 %v88, %v88
    %v103 = vpack.c.bf16 %v89, %v89
    %v104 = vpack.c.bf16 %v90, %v90
    %v105 = vpack.c.bf16 %v91, %v91
    %v106 = vpack.c.bf16 %v92, %v92
    %v107 = vpack.c.bf16 %v93, %v93
    %v108 = vpack.c.bf16 %v94, %v94
    %v109 = vld [vmem:[#allocation4] sm:$0xf]
    %v110 = vld [vmem:[#allocation4 + $0x4] sm:$0xf]
    %v111 = vld [vmem:[#allocation4 + $0x8] sm:$0xf]
    %v112 = vld [vmem:[#allocation4 + $0xc] sm:$0xf]
    %v113 = vld [vmem:[#allocation4 + $0x10] sm:$0xf]
    %v114 = vld [vmem:[#allocation4 + $0x14] sm:$0xf]
    %v115 = vld [vmem:[#allocation4 + $0x18] sm:$0xf]
    %v116 = vld [vmem:[#allocation4 + $0x1c] sm:$0xf]
    %v117 = vld [vmem:[#allocation4 + $0x20] sm:$0xf]
    %v118 = vld [vmem:[#allocation4 + $0x24] sm:$0xf]
    %v119 = vld [vmem:[#allocation4 + $0x28] sm:$0xf]
    %v120 = vld [vmem:[#allocation4 + $0x2c] sm:$0xf]
    %v121 = vld [vmem:[#allocation4 + $0x30] sm:$0xf]
    %v122 = vld [vmem:[#allocation4 + $0x34] sm:$0xf]
    %v123 = vld [vmem:[#allocation4 + $0x38] sm:$0xf]
    %v124 = vld [vmem:[#allocation4 + $0x3c] sm:$0xf]
    %v125 = vld [vmem:[#allocation4 + $0x40] sm:$0xf]
    %v126 = vld [vmem:[#allocation4 + $0x44] sm:$0xf]
    %v127 = vld [vmem:[#allocation4 + $0x48] sm:$0xf]
    %v128 = vld [vmem:[#allocation4 + $0x4c] sm:$0xf]
    %v129 = vld [vmem:[#allocation4 + $0x50] sm:$0xf]
    %v130 = vld [vmem:[#allocation4 + $0x54] sm:$0xf]
    %v131 = vld [vmem:[#allocation4 + $0x58] sm:$0xf]
    %v132 = vld [vmem:[#allocation4 + $0x5c] sm:$0xf]
    %v133 = vld [vmem:[#allocation4 + $0x60] sm:$0xf]
    %v134 = vld [vmem:[#allocation4 + $0x64] sm:$0xf]
    %v135 = vld [vmem:[#allocation4 + $0x68] sm:$0xf]
    %v136 = vld [vmem:[#allocation4 + $0x6c] sm:$0xf]
    %v137 = vld [vmem:[#allocation4 + $0x70] sm:$0xf]
    %v138 = vld [vmem:[#allocation4 + $0x74] sm:$0xf]
    %v139 = vld [vmem:[#allocation4 + $0x78] sm:$0xf]
    %v140 = vld [vmem:[#allocation4 + $0x7c] sm:$0xf]
    %v141 = vld [vmem:[#allocation4 + $0x80] sm:$0xf]
    %v142 = vld [vmem:[#allocation4 + $0x84] sm:$0xf]
    %v143 = vld [vmem:[#allocation4 + $0x88] sm:$0xf]
    %v144 = vld [vmem:[#allocation4 + $0x8c] sm:$0xf]
    %v145 = vld [vmem:[#allocation4 + $0x90] sm:$0xf]
    %v146 = vld [vmem:[#allocation4 + $0x94] sm:$0xf]
    %v147 = vld [vmem:[#allocation4 + $0x98] sm:$0xf]
    %v148 = vld [vmem:[#allocation4 + $0x9c] sm:$0xf]
    %v149 = vld [vmem:[#allocation4 + $0xa0] sm:$0xf]
    %v150 = vld [vmem:[#allocation4 + $0xa4] sm:$0xf]
    %v151 = vld [vmem:[#allocation4 + $0xa8] sm:$0xf]
    %v152 = vld [vmem:[#allocation4 + $0xac] sm:$0xf]
    %v153 = vld [vmem:[#allocation4 + $0xb0] sm:$0xf]
    %v154 = vld [vmem:[#allocation4 + $0xb4] sm:$0xf]
    %v155 = vld [vmem:[#allocation4 + $0xb8] sm:$0xf]
    %v156 = vld [vmem:[#allocation4 + $0xbc] sm:$0xf]
    %v157 = vld [vmem:[#allocation4 + $0xc0] sm:$0xf]
    %v158 = vld [vmem:[#allocation4 + $0xc4] sm:$0xf]
    %v159 = vld [vmem:[#allocation4 + $0xc8] sm:$0xf]
    %v160 = vld [vmem:[#allocation4 + $0xcc] sm:$0xf]
    %v161 = vld [vmem:[#allocation4 + $0xd0] sm:$0xf]
    %v162 = vld [vmem:[#allocation4 + $0xd4] sm:$0xf]
    %v163 = vld [vmem:[#allocation4 + $0xd8] sm:$0xf]
    %v164 = vld [vmem:[#allocation4 + $0xdc] sm:$0xf]
    %v165 = vld [vmem:[#allocation4 + $0xe0] sm:$0xf]
    %v166 = vld [vmem:[#allocation4 + $0xe4] sm:$0xf]
    %v167 = vld [vmem:[#allocation4 + $0xe8] sm:$0xf]
    %v168 = vld [vmem:[#allocation4 + $0xec] sm:$0xf]
    %v169 = vld [vmem:[#allocation4 + $0xf0] sm:$0xf]
    %v170 = vld [vmem:[#allocation4 + $0xf4] sm:$0xf]
    %v171 = vld [vmem:[#allocation4 + $0xf8] sm:$0xf]
    %v172 = vld [vmem:[#allocation4 + $0xfc] sm:$0xf]
    %v173 = vld [vmem:[#allocation4 + $0x100] sm:$0xf]
    %v174 = vld [vmem:[#allocation4 + $0x104] sm:$0xf]
    %v175 = vld [vmem:[#allocation4 + $0x108] sm:$0xf]
    %v176 = vld [vmem:[#allocation4 + $0x10c] sm:$0xf]
    %v177 = vld [vmem:[#allocation4 + $0x110] sm:$0xf]
    %v178 = vld [vmem:[#allocation4 + $0x114] sm:$0xf]
    %v179 = vld [vmem:[#allocation4 + $0x118] sm:$0xf]
    %v180 = vld [vmem:[#allocation4 + $0x11c] sm:$0xf]
    %v181 = vld [vmem:[#allocation4 + $0x120] sm:$0xf]
    %v182 = vld [vmem:[#allocation4 + $0x124] sm:$0xf]
    %v183 = vld [vmem:[#allocation4 + $0x128] sm:$0xf]
    %v184 = vld [vmem:[#allocation4 + $0x12c] sm:$0xf]
    %v185 = vld [vmem:[#allocation4 + $0x130] sm:$0xf]
    %v186 = vld [vmem:[#allocation4 + $0x134] sm:$0xf]
    %v187 = vld [vmem:[#allocation4 + $0x138] sm:$0xf]
    %v188 = vld [vmem:[#allocation4 + $0x13c] sm:$0xf]
    %v189 = vld [vmem:[#allocation4 + $0x140] sm:$0xf]
    %v190 = vld [vmem:[#allocation4 + $0x144] sm:$0xf]
    %v191 = vld [vmem:[#allocation4 + $0x148] sm:$0xf]
    %v192 = vld [vmem:[#allocation4 + $0x14c] sm:$0xf]
    %v193 = vld [vmem:[#allocation4 + $0x150] sm:$0xf]
    %v194 = vld [vmem:[#allocation4 + $0x154] sm:$0xf]
    %v195 = vld [vmem:[#allocation4 + $0x158] sm:$0xf]
    %v196 = vld [vmem:[#allocation4 + $0x15c] sm:$0xf]
    %v197 = vld [vmem:[#allocation4 + $0x160] sm:$0xf]
    %v198 = vld [vmem:[#allocation4 + $0x164] sm:$0xf]
    %v199 = vld [vmem:[#allocation4 + $0x168] sm:$0xf]
    %v200 = vld [vmem:[#allocation4 + $0x16c] sm:$0xf]
    %v201 = vld [vmem:[#allocation4 + $0x170] sm:$0xf]
    %v202 = vld [vmem:[#allocation4 + $0x174] sm:$0xf]
    %v203 = vld [vmem:[#allocation4 + $0x178] sm:$0xf]
    %v204 = vld [vmem:[#allocation4 + $0x17c] sm:$0xf]
    %v205 = vld [vmem:[#allocation4 + $0x180] sm:$0xf]
    %v206 = vld [vmem:[#allocation4 + $0x184] sm:$0xf]
    %v207 = vld [vmem:[%s2] sm:$0x1]
    %v209 = vlaneseq
    %v210 = vshrl.u32 %v209, 7
    %v211 = vsub.s32 0, %v210
    %v212 = vrot.slane %v207, %v211
    %v312 = vunpack.c.l.b16 %v109
    %v313 = vunpack.c.l.b16 %v110
    %v314 = vunpack.c.l.b16 %v111
    %v315 = vunpack.c.l.b16 %v112
    %v316 = vunpack.c.l.b16 %v113
    %v317 = vunpack.c.l.b16 %v114
    %v318 = vunpack.c.l.b16 %v115
    %v319 = vunpack.c.l.b16 %v116
    %v320 = vunpack.c.l.b16 %v117
    %v321 = vunpack.c.l.b16 %v118
    %v322 = vunpack.c.l.b16 %v119
    %v323 = vunpack.c.l.b16 %v120
    %v324 = vunpack.c.l.b16 %v121
    %v325 = vunpack.c.l.b16 %v122
    %v326 = vunpack.c.l.b16 %v123
    %v327 = vunpack.c.l.b16 %v124
    %v328 = vunpack.c.l.b16 %v125
    %v329 = vunpack.c.l.b16 %v126
    %v330 = vunpack.c.l.b16 %v127
    %v331 = vunpack.c.l.b16 %v128
    %v332 = vunpack.c.l.b16 %v129
    %v333 = vunpack.c.l.b16 %v130
    %v334 = vunpack.c.l.b16 %v131
    %v335 = vunpack.c.l.b16 %v132
    %v336 = vunpack.c.l.b16 %v133
    %v337 = vunpack.c.l.b16 %v134
    %v338 = vunpack.c.l.b16 %v135
    %v339 = vunpack.c.l.b16 %v136
    %v340 = vunpack.c.l.b16 %v137
    %v341 = vunpack.c.l.b16 %v138
    %v342 = vunpack.c.l.b16 %v139
    %v343 = vunpack.c.l.b16 %v140
    %v344 = vunpack.c.l.b16 %v141
    %v345 = vunpack.c.l.b16 %v142
    %v346 = vunpack.c.l.b16 %v143
    %v347 = vunpack.c.l.b16 %v144
    %v348 = vunpack.c.l.b16 %v145
    %v349 = vunpack.c.l.b16 %v146
    %v350 = vunpack.c.l.b16 %v147
    %v351 = vunpack.c.l.b16 %v148
    %v352 = vunpack.c.l.b16 %v149
    %v353 = vunpack.c.l.b16 %v150
    %v354 = vunpack.c.l.b16 %v151
    %v355 = vunpack.c.l.b16 %v152
    %v356 = vunpack.c.l.b16 %v153
    %v357 = vunpack.c.l.b16 %v154
    %v358 = vunpack.c.l.b16 %v155
    %v359 = vunpack.c.l.b16 %v156
    %v360 = vunpack.c.l.b16 %v157
    %v361 = vunpack.c.l.b16 %v158
    %v362 = vunpack.c.l.b16 %v159
    %v363 = vunpack.c.l.b16 %v160
    %v364 = vunpack.c.l.b16 %v161
    %v365 = vunpack.c.l.b16 %v162
    %v366 = vunpack.c.l.b16 %v163
    %v367 = vunpack.c.l.b16 %v164
    %v368 = vunpack.c.l.b16 %v165
    %v369 = vunpack.c.l.b16 %v166
    %v370 = vunpack.c.l.b16 %v167
    %v371 = vunpack.c.l.b16 %v168
    %v372 = vunpack.c.l.b16 %v169
    %v373 = vunpack.c.l.b16 %v170
    %v374 = vunpack.c.l.b16 %v171
    %v375 = vunpack.c.l.b16 %v172
    %v376 = vunpack.c.l.b16 %v173
    %v377 = vunpack.c.l.b16 %v174
    %v378 = vunpack.c.l.b16 %v175
    %v379 = vunpack.c.l.b16 %v176
    %v380 = vunpack.c.l.b16 %v177
    %v381 = vunpack.c.l.b16 %v178
    %v382 = vunpack.c.l.b16 %v179
    %v383 = vunpack.c.l.b16 %v180
    %v384 = vunpack.c.l.b16 %v181
    %v385 = vunpack.c.l.b16 %v182
    %v386 = vunpack.c.l.b16 %v183
    %v387 = vunpack.c.l.b16 %v184
    %v388 = vunpack.c.l.b16 %v185
    %v389 = vunpack.c.l.b16 %v186
    %v390 = vunpack.c.l.b16 %v187
    %v391 = vunpack.c.l.b16 %v188
    %v392 = vunpack.c.l.b16 %v189
    %v393 = vunpack.c.l.b16 %v190
    %v394 = vunpack.c.l.b16 %v191
    %v395 = vunpack.c.l.b16 %v192
    %v396 = vunpack.c.l.b16 %v193
    %v397 = vunpack.c.l.b16 %v194
    %v398 = vunpack.c.l.b16 %v195
    %v399 = vunpack.c.l.b16 %v196
    %v400 = vunpack.c.l.b16 %v197
    %v401 = vunpack.c.l.b16 %v198
    %v402 = vunpack.c.l.b16 %v199
    %v403 = vunpack.c.l.b16 %v200
    %v404 = vunpack.c.l.b16 %v201
    %v405 = vunpack.c.l.b16 %v202
    %v406 = vunpack.c.l.b16 %v203
    %v407 = vunpack.c.l.b16 %v204
    %v408 = vunpack.c.l.b16 %v205
    %v409 = vunpack.c.l.b16 %v206
    %v410 = vpack.c.b16 %v313, %v312
    %v411 = vpack.c.b16 %v315, %v314
    %v412 = vpack.c.b16 %v317, %v316
    %v413 = vpack.c.b16 %v319, %v318
    %v414 = vpack.c.b16 %v321, %v320
    %v415 = vpack.c.b16 %v323, %v322
    %v416 = vpack.c.b16 %v325, %v324
    %v417 = vpack.c.b16 %v327, %v326
    %v418 = vpack.c.b16 %v329, %v328
    %v419 = vpack.c.b16 %v331, %v330
    %v420 = vpack.c.b16 %v333, %v332
    %v421 = vpack.c.b16 %v335, %v334
    %v422 = vpack.c.b16 %v337, %v336
    %v423 = vpack.c.b16 %v339, %v338
    %v424 = vpack.c.b16 %v341, %v340
    %v425 = vpack.c.b16 %v343, %v342
    %v426 = vpack.c.b16 %v345, %v344
    %v427 = vpack.c.b16 %v347, %v346
    %v428 = vpack.c.b16 %v349, %v348
    %v429 = vpack.c.b16 %v351, %v350
    %v430 = vpack.c.b16 %v353, %v352
    %v431 = vpack.c.b16 %v355, %v354
    %v432 = vpack.c.b16 %v357, %v356
    %v433 = vpack.c.b16 %v359, %v358
    %v434 = vpack.c.b16 %v361, %v360
    %v435 = vpack.c.b16 %v363, %v362
    %v436 = vpack.c.b16 %v365, %v364
    %v437 = vpack.c.b16 %v367, %v366
    %v438 = vpack.c.b16 %v369, %v368
    %v439 = vpack.c.b16 %v371, %v370
    %v440 = vpack.c.b16 %v373, %v372
    %v441 = vpack.c.b16 %v375, %v374
    %v442 = vpack.c.b16 %v377, %v376
    %v443 = vpack.c.b16 %v379, %v378
    %v444 = vpack.c.b16 %v381, %v380
    %v445 = vpack.c.b16 %v383, %v382
    %v446 = vpack.c.b16 %v385, %v384
    %v447 = vpack.c.b16 %v387, %v386
    %v448 = vpack.c.b16 %v389, %v388
    %v449 = vpack.c.b16 %v391, %v390
    %v450 = vpack.c.b16 %v393, %v392
    %v451 = vpack.c.b16 %v395, %v394
    %v452 = vpack.c.b16 %v397, %v396
    %v453 = vpack.c.b16 %v399, %v398
    %v454 = vpack.c.b16 %v401, %v400
    %v455 = vpack.c.b16 %v403, %v402
    %v456 = vpack.c.b16 %v405, %v404
    %v457 = vpack.c.b16 %v407, %v406
    %v458 = vpack.c.b16 %v409, %v408
    %vm508 = vcmask 130048
    %v510 = vsel %vm508, %v101, 0
    %v513 = vsel %vm508, %v108, 0
    %515 = vmatprep.subr.bf16.mxu0 0
    %516 = vmatpush1.bf16.msra.mxu0 %v410
    %517 = vmatprep.subr.bf16.mxu0 0
    %518 = vmatpush1.bf16.msra.mxu0 %v411
    %519 = vmatprep.subr.bf16.mxu0 0
    %520 = vmatpush1.bf16.msra.mxu0 %v412
    %521 = vmatprep.subr.bf16.mxu0 0
    %522 = vmatpush1.bf16.msra.mxu0 %v413
    %523 = vmatprep.subr.bf16.mxu0 0
    %524 = vmatpush1.bf16.msra.mxu0 %v414
    %525 = vmatprep.subr.bf16.mxu0 0
    %526 = vmatpush1.bf16.msra.mxu0 %v415
    %527 = vmatprep.subr.bf16.mxu0 0
    %528 = vmatpush1.bf16.msra.mxu0 %v416
    %529 = vmatprep.subr.bf16.mxu0 0
    %530 = vmatpush1.bf16.msra.mxu0 %v417
    %531 = vmatprep.subr.bf16.mxu0 0
    %532 = vmatpush1.bf16.msra.mxu0 %v418
    %533 = vmatprep.subr.bf16.mxu0 0
    %534 = vmatpush1.bf16.msra.mxu0 %v419
    %535 = vmatprep.subr.bf16.mxu0 0
    %536 = vmatpush1.bf16.msra.mxu0 %v420
    %537 = vmatprep.subr.bf16.mxu0 0
    %538 = vmatpush1.bf16.msra.mxu0 %v421
    %539 = vmatprep.subr.bf16.mxu0 0
    %540 = vmatpush1.bf16.msra.mxu0 %v422
    %541 = vmatprep.subr.bf16.mxu0 0
    %542 = vmatpush1.bf16.msra.mxu0 %v423
    %543 = vmatprep.subr.bf16.mxu0 0
    %544 = vmatpush1.bf16.msra.mxu0 %v424
    %545 = vmatprep.subr.bf16.mxu0 0
    %546 = vmatpush1.bf16.msra.mxu0 %v425
    %547 = vmatprep.mubr.bf16.mxu0 %v96
    %548 = vmatmul.mubr.bf16.gmra.mrb[0].mxu0 %v95
    %v549 = vpop.f32.mrb[0].mxu0
    %v550 = vadd.f32 %v212, %v549
    %v551 = vpop.f32.mrb[0].mxu0
    %v552 = vpop.f32.mrb[0].mxu0
    %v553 = vadd.f32 %v212, %v552
    %v554 = vpop.f32.mrb[0].mxu0
    %555 = vmatprep.mubr.bf16.mxu0 %v103
    %556 = vmatmul.mubr.bf16.gmra.mrb[0].mxu0 %v102
    %v557 = vpop.f32.mrb[0].mxu0
    %v558 = vadd.f32 %v212, %v557
    %v559 = vpop.f32.mrb[0].mxu0
    %v560 = vpop.f32.mrb[0].mxu0
    %v561 = vpop.f32.mrb[0].mxu0
    %562 = vdwg.mxu0
    %563 = vmatprep.subr.bf16.mxu0 0
    %564 = vmatpush1.bf16.msra.mxu0 %v426
    %565 = vmatprep.subr.bf16.mxu0 0
    %566 = vmatpush1.bf16.msra.mxu0 %v427
    %567 = vmatprep.subr.bf16.mxu0 0
    %568 = vmatpush1.bf16.msra.mxu0 %v428
    %569 = vmatprep.subr.bf16.mxu0 0
    %570 = vmatpush1.bf16.msra.mxu0 %v429
    %571 = vmatprep.subr.bf16.mxu0 0
    %572 = vmatpush1.bf16.msra.mxu0 %v430
    %573 = vmatprep.subr.bf16.mxu0 0
    %574 = vmatpush1.bf16.msra.mxu0 %v431
    %575 = vmatprep.subr.bf16.mxu0 0
    %576 = vmatpush1.bf16.msra.mxu0 %v432
    %577 = vmatprep.subr.bf16.mxu0 0
    %578 = vmatpush1.bf16.msra.mxu0 %v433
    %579 = vmatprep.subr.bf16.mxu0 0
    %580 = vmatpush1.bf16.msra.mxu0 %v434
    %581 = vmatprep.subr.bf16.mxu0 0
    %582 = vmatpush1.bf16.msra.mxu0 %v435
    %583 = vmatprep.subr.bf16.mxu0 0
    %584 = vmatpush1.bf16.msra.mxu0 %v436
    %585 = vmatprep.subr.bf16.mxu0 0
    %586 = vmatpush1.bf16.msra.mxu0 %v437
    %587 = vmatprep.subr.bf16.mxu0 0
    %588 = vmatpush1.bf16.msra.mxu0 %v438
    %589 = vmatprep.subr.bf16.mxu0 0
    %590 = vmatpush1.bf16.msra.mxu0 %v439
    %591 = vmatprep.subr.bf16.mxu0 0
    %592 = vmatpush1.bf16.msra.mxu0 %v440
    %593 = vmatprep.subr.bf16.mxu0 0
    %594 = vmatpush1.bf16.msra.mxu0 %v441
    %595 = vmatprep.mubr.bf16.mxu0 %v98
    %596 = vmatmul.mubr.bf16.gmra.mrb[0].mxu0 %v97
    %v597 = vpop.f32.mrb[0].mxu0
    %v598 = vadd.f32 %v550, %v597
    %v599 = vpop.f32.mrb[0].mxu0
    %v600 = vpop.f32.mrb[0].mxu0
    %v601 = vadd.f32 %v553, %v600
    %v602 = vpop.f32.mrb[0].mxu0
    %603 = vmatprep.mubr.bf16.mxu0 %v105
    %604 = vmatmul.mubr.bf16.gmra.mrb[0].mxu0 %v104
    %v605 = vpop.f32.mrb[0].mxu0
    %v606 = vadd.f32 %v558, %v605
    %v607 = vpop.f32.mrb[0].mxu0
    %v608 = vpop.f32.mrb[0].mxu0
    %v609 = vpop.f32.mrb[0].mxu0
    %610 = vdwg.mxu0
    %611 = vmatprep.subr.bf16.mxu0 0
    %612 = vmatpush1.bf16.msra.mxu0 %v442
    %613 = vmatprep.subr.bf16.mxu0 0
    %614 = vmatpush1.bf16.msra.mxu0 %v443
    %615 = vmatprep.subr.bf16.mxu0 0
    %616 = vmatpush1.bf16.msra.mxu0 %v444
    %617 = vmatprep.subr.bf16.mxu0 0
    %618 = vmatpush1.bf16.msra.mxu0 %v445
    %619 = vmatprep.subr.bf16.mxu0 0
    %620 = vmatpush1.bf16.msra.mxu0 %v446
    %621 = vmatprep.subr.bf16.mxu0 0
    %622 = vmatpush1.bf16.msra.mxu0 %v447
    %623 = vmatprep.subr.bf16.mxu0 0
    %624 = vmatpush1.bf16.msra.mxu0 %v448
    %625 = vmatprep.subr.bf16.mxu0 0
    %626 = vmatpush1.bf16.msra.mxu0 %v449
    %627 = vmatprep.subr.bf16.mxu0 0
    %628 = vmatpush1.bf16.msra.mxu0 %v450
    %629 = vmatprep.subr.bf16.mxu0 0
    %630 = vmatpush1.bf16.msra.mxu0 %v451
    %631 = vmatprep.subr.bf16.mxu0 0
    %632 = vmatpush1.bf16.msra.mxu0 %v452
    %633 = vmatprep.subr.bf16.mxu0 0
    %634 = vmatpush1.bf16.msra.mxu0 %v453
    %635 = vmatprep.subr.bf16.mxu0 0
    %636 = vmatpush1.bf16.msra.mxu0 %v454
    %637 = vmatprep.subr.bf16.mxu0 0
    %638 = vmatpush1.bf16.msra.mxu0 %v455
    %639 = vmatprep.subr.bf16.mxu0 0
    %640 = vmatpush1.bf16.msra.mxu0 %v456
    %641 = vmatprep.subr.bf16.mxu0 0
    %642 = vmatpush1.bf16.msra.mxu0 %v457
    %643 = vmatprep.mubr.bf16.mxu0 %v100
    %644 = vmatmul.mubr.bf16.gmra.mrb[0].mxu0 %v99
    %v645 = vpop.f32.mrb[0].mxu0
    %v646 = vadd.f32 %v598, %v645
    %v647 = vpop.f32.mrb[0].mxu0
    %v648 = vpop.f32.mrb[0].mxu0
    %v649 = vadd.f32 %v601, %v648
    %v650 = vpop.f32.mrb[0].mxu0
    %651 = vmatprep.mubr.bf16.mxu0 %v107
    %652 = vmatmul.mubr.bf16.gmra.mrb[0].mxu0 %v106
    %v653 = vpop.f32.mrb[0].mxu0
    %v654 = vadd.f32 %v606, %v653
    %v655 = vpop.f32.mrb[0].mxu0
    %v656 = vpop.f32.mrb[0].mxu0
    %v657 = vpop.f32.mrb[0].mxu0
    %658 = vdwg.mxu0
    %659 = vmatprep.subr.bf16.mxu0 0
    %660 = vmatpush1.bf16.msra.mxu0 %v458
    %661 = vmatprep.subr.bf16.mxu0 0
    %662 = vmatpush1.bf16.msra.mxu0 0
    %663 = vmatprep.subr.bf16.mxu0 0
    %664 = vmatpush1.bf16.msra.mxu0 0
    %665 = vmatprep.subr.bf16.mxu0 0
    %666 = vmatpush1.bf16.msra.mxu0 0
    %667 = vmatprep.subr.bf16.mxu0 0
    %668 = vmatpush1.bf16.msra.mxu0 0
    %669 = vmatprep.subr.bf16.mxu0 0
    %670 = vmatpush1.bf16.msra.mxu0 0
    %671 = vmatprep.subr.bf16.mxu0 0
    %672 = vmatpush1.bf16.msra.mxu0 0
    %673 = vmatprep.subr.bf16.mxu0 0
    %674 = vmatpush1.bf16.msra.mxu0 0
    %675 = vmatprep.subr.bf16.mxu0 0
    %676 = vmatpush1.bf16.msra.mxu0 0
    %677 = vmatprep.subr.bf16.mxu0 0
    %678 = vmatpush1.bf16.msra.mxu0 0
    %679 = vmatprep.subr.bf16.mxu0 0
    %680 = vmatpush1.bf16.msra.mxu0 0
    %681 = vmatprep.subr.bf16.mxu0 0
    %682 = vmatpush1.bf16.msra.mxu0 0
    %683 = vmatprep.subr.bf16.mxu0 0
    %684 = vmatpush1.bf16.msra.mxu0 0
    %685 = vmatprep.subr.bf16.mxu0 0
    %686 = vmatpush1.bf16.msra.mxu0 0
    %687 = vmatprep.subr.bf16.mxu0 0
    %688 = vmatpush1.bf16.msra.mxu0 0
    %689 = vmatprep.subr.bf16.mxu0 0
    %690 = vmatpush1.bf16.msra.mxu0 0
    %691 = vmatprep.mubr.bf16.mxu0 0
    %692 = vmatmul.mubr.bf16.gmra.mrb[0].mxu0 %v510
    %v693 = vpop.f32.mrb[0].mxu0
    %v694 = vadd.f32 %v646, %v693
    %v695 = vpop.f32.mrb[0].mxu0
    %v696 = vpop.f32.mrb[0].mxu0
    %v697 = vadd.f32 %v649, %v696
    %v698 = vpop.f32.mrb[0].mxu0
    %699 = vmatprep.mubr.bf16.mxu0 0
    %700 = vmatmul.mubr.bf16.gmra.mrb[0].mxu0 %v513
    %v701 = vpop.f32.mrb[0].mxu0
    %v702 = vadd.f32 %v654, %v701
    %v703 = vpop.f32.mrb[0].mxu0
    %v704 = vpop.f32.mrb[0].mxu0
    %v705 = vpop.f32.mrb[0].mxu0
    %706 = vdwg.mxu0
    %v707 = vpack.c.bf16 %v697, %v694
    %v708 = vpack.c.bf16 %v702, %v702
    %v709 = vld [vmem:[%s3] sm:$0xf]
    %v710 = vld [vmem:[%s3 + $0x4] sm:$0xf]
    %v711 = vld [vmem:[%s3 + $0x8] sm:$0xf]
    %v712 = vld [vmem:[%s3 + $0xc] sm:$0xf]
    %v713 = vld [vmem:[%s3 + $0x10] sm:$0xf]
    %v714 = vld [vmem:[%s3 + $0x14] sm:$0xf]
    %v715 = vld [vmem:[%s3 + $0x18] sm:$0xf]
    %v716 = vld [vmem:[%s3 + $0x1c] sm:$0xf]
    %v717 = vld [vmem:[%s3 + $0x20] sm:$0xf]
    %v718 = vld [vmem:[%s3 + $0x24] sm:$0xf]
    %v719 = vld [vmem:[%s3 + $0x28] sm:$0xf]
    %v720 = vld [vmem:[%s3 + $0x2c] sm:$0xf]
    %v721 = vld [vmem:[%s3 + $0x30] sm:$0xf]
    %v722 = vld [vmem:[%s3 + $0x34] sm:$0xf]
    %v723 = vld [vmem:[%s3 + $0x38] sm:$0xf]
    %v724 = vld [vmem:[%s3 + $0x3c] sm:$0xf]
    %v725 = vld [vmem:[%s4] sm:$0x1]
    %v727 = vlaneseq
    %v728 = vshrl.u32 %v727, 7
    %v729 = vsub.s32 0, %v728
    %v730 = vrot.slane %v725, %v729
    %v748 = vunpack.c.l.b16 %v709
    %v749 = vunpack.c.l.b16 %v710
    %v750 = vunpack.c.l.b16 %v711
    %v751 = vunpack.c.l.b16 %v712
    %v752 = vunpack.c.l.b16 %v713
    %v753 = vunpack.c.l.b16 %v714
    %v754 = vunpack.c.l.b16 %v715
    %v755 = vunpack.c.l.b16 %v716
    %v756 = vunpack.c.l.b16 %v717
    %v757 = vunpack.c.l.b16 %v718
    %v758 = vunpack.c.l.b16 %v719
    %v759 = vunpack.c.l.b16 %v720
    %v760 = vunpack.c.l.b16 %v721
    %v761 = vunpack.c.l.b16 %v722
    %v762 = vunpack.c.l.b16 %v723
    %v763 = vunpack.c.l.b16 %v724
    %v764 = vpack.c.b16 %v749, %v748
    %v765 = vpack.c.b16 %v751, %v750
    %v766 = vpack.c.b16 %v753, %v752
    %v767 = vpack.c.b16 %v755, %v754
    %v768 = vpack.c.b16 %v757, %v756
    %v769 = vpack.c.b16 %v759, %v758
    %v770 = vpack.c.b16 %v761, %v760
    %v771 = vpack.c.b16 %v763, %v762
    %780 = vmatprep.subr.bf16.mxu0 0
    %781 = vmatpush1.bf16.msra.mxu0 %v764
    %782 = vmatprep.subr.bf16.mxu0 0
    %783 = vmatpush1.bf16.msra.mxu0 %v765
    %784 = vmatprep.subr.bf16.mxu0 0
    %785 = vmatpush1.bf16.msra.mxu0 %v766
    %786 = vmatprep.subr.bf16.mxu0 0
    %787 = vmatpush1.bf16.msra.mxu0 %v767
    %788 = vmatprep.subr.bf16.mxu0 0
    %789 = vmatpush1.bf16.msra.mxu0 %v768
    %790 = vmatprep.subr.bf16.mxu0 0
    %791 = vmatpush1.bf16.msra.mxu0 %v769
    %792 = vmatprep.subr.bf16.mxu0 0
    %793 = vmatpush1.bf16.msra.mxu0 %v770
    %794 = vmatprep.subr.bf16.mxu0 0
    %795 = vmatpush1.bf16.msra.mxu0 %v771
    %796 = vmatprep.subr.bf16.mxu0 0
    %797 = vmatpush1.bf16.msra.mxu0 0
    %798 = vmatprep.subr.bf16.mxu0 0
    %799 = vmatpush1.bf16.msra.mxu0 0
    %800 = vmatprep.subr.bf16.mxu0 0
    %801 = vmatpush1.bf16.msra.mxu0 0
    %802 = vmatprep.subr.bf16.mxu0 0
    %803 = vmatpush1.bf16.msra.mxu0 0
    %804 = vmatprep.subr.bf16.mxu0 0
    %805 = vmatpush1.bf16.msra.mxu0 0
    %806 = vmatprep.subr.bf16.mxu0 0
    %807 = vmatpush1.bf16.msra.mxu0 0
    %808 = vmatprep.subr.bf16.mxu0 0
    %809 = vmatpush1.bf16.msra.mxu0 0
    %810 = vmatprep.subr.bf16.mxu0 0
    %811 = vmatpush1.bf16.msra.mxu0 0
    %812 = vmatprep.mubr.bf16.mxu0 0
    %813 = vmatmul.mubr.bf16.gmra.mrb[0].mxu0 %v707
    %v814 = vpop.f32.mrb[0].mxu0
    %v815 = vadd.f32 %v730, %v814
    %v816 = vpop.f32.mrb[0].mxu0
    %v817 = vpop.f32.mrb[0].mxu0
    %v818 = vadd.f32 %v730, %v817
    %v819 = vpop.f32.mrb[0].mxu0
    %820 = vmatprep.mubr.bf16.mxu0 0
    %821 = vmatmul.mubr.bf16.gmra.mrb[0].mxu0 %v708
    %v822 = vpop.f32.mrb[0].mxu0
    %v823 = vadd.f32 %v730, %v822
    %v824 = vpop.f32.mrb[0].mxu0
    %v825 = vpop.f32.mrb[0].mxu0
    %v826 = vpop.f32.mrb[0].mxu0
    %827 = vdwg.mxu0
    %v828 = vmax.f32 %v815, 0.0
    %v829 = vmax.f32 %v818, 0.0
    %v830 = vmax.f32 %v823, 0.0
    %v831 = vpack.c.bf16 %v829, %v828
    %v832 = vpack.c.bf16 %v830, %v830
    %v833 = vld [vmem:[#allocation6] sm:$0xf]
    %v834 = vld [vmem:[#allocation6 + $0x4] sm:$0xf]
    %v835 = vld [vmem:[#allocation6 + $0x8] sm:$0xf]
    %v836 = vld [vmem:[#allocation6 + $0xc] sm:$0xf]
    %v837 = vld [vmem:[#allocation6 + $0x10] sm:$0xf]
    %v838 = vld [vmem:[#allocation6 + $0x14] sm:$0xf]
    %v839 = vld [vmem:[#allocation6 + $0x18] sm:$0xf]
    %v840 = vld [vmem:[#allocation6 + $0x1c] sm:$0xf]
    %v841 = vld [vmem:[#allocation6 + $0x20] sm:$0xf]
    %v842 = vld [vmem:[#allocation6 + $0x24] sm:$0xf]
    %v843 = vld [vmem:[#allocation6 + $0x28] sm:$0xf]
    %v844 = vld [vmem:[#allocation6 + $0x2c] sm:$0xf]
    %v845 = vld [vmem:[#allocation6 + $0x30] sm:$0xf]
    %v846 = vld [vmem:[#allocation6 + $0x34] sm:$0xf]
    %v847 = vld [vmem:[#allocation6 + $0x38] sm:$0xf]
    %v848 = vld [vmem:[#allocation6 + $0x3c] sm:$0xf]
    %v849 = vld [vmem:[%s6] sm:$0x1]
    %v851 = vlaneseq
    %v852 = vshrl.u32 %v851, 7
    %v853 = vsub.s32 0, %v852
    %v854 = vrot.slane %v849, %v853
    %v872 = vunpack.c.l.b16 %v833
    %v873 = vunpack.c.l.b16 %v834
    %v874 = vunpack.c.l.b16 %v835
    %v875 = vunpack.c.l.b16 %v836
    %v876 = vunpack.c.l.b16 %v837
    %v877 = vunpack.c.l.b16 %v838
    %v878 = vunpack.c.l.b16 %v839
    %v879 = vunpack.c.l.b16 %v840
    %v880 = vunpack.c.l.b16 %v841
    %v881 = vunpack.c.l.b16 %v842
    %v882 = vunpack.c.l.b16 %v843
    %v883 = vunpack.c.l.b16 %v844
    %v884 = vunpack.c.l.b16 %v845
    %v885 = vunpack.c.l.b16 %v846
    %v886 = vunpack.c.l.b16 %v847
    %v887 = vunpack.c.l.b16 %v848
    %v888 = vpack.c.b16 %v873, %v872
    %v889 = vpack.c.b16 %v875, %v874
    %v890 = vpack.c.b16 %v877, %v876
    %v891 = vpack.c.b16 %v879, %v878
    %v892 = vpack.c.b16 %v881, %v880
    %v893 = vpack.c.b16 %v883, %v882
    %v894 = vpack.c.b16 %v885, %v884
    %v895 = vpack.c.b16 %v887, %v886
    %904 = vmatprep.subr.bf16.mxu0 0
    %905 = vmatpush1.bf16.msra.mxu0 %v888
    %906 = vmatprep.subr.bf16.mxu0 0
    %907 = vmatpush1.bf16.msra.mxu0 %v889
    %908 = vmatprep.subr.bf16.mxu0 0
    %909 = vmatpush1.bf16.msra.mxu0 %v890
    %910 = vmatprep.subr.bf16.mxu0 0
    %911 = vmatpush1.bf16.msra.mxu0 %v891
    %912 = vmatprep.subr.bf16.mxu0 0
    %913 = vmatpush1.bf16.msra.mxu0 %v892
    %914 = vmatprep.subr.bf16.mxu0 0
    %915 = vmatpush1.bf16.msra.mxu0 %v893
    %916 = vmatprep.subr.bf16.mxu0 0
    %917 = vmatpush1.bf16.msra.mxu0 %v894
    %918 = vmatprep.subr.bf16.mxu0 0
    %919 = vmatpush1.bf16.msra.mxu0 %v895
    %920 = vmatprep.subr.bf16.mxu0 0
    %921 = vmatpush1.bf16.msra.mxu0 0
    %922 = vmatprep.subr.bf16.mxu0 0
    %923 = vmatpush1.bf16.msra.mxu0 0
    %924 = vmatprep.subr.bf16.mxu0 0
    %925 = vmatpush1.bf16.msra.mxu0 0
    %926 = vmatprep.subr.bf16.mxu0 0
    %927 = vmatpush1.bf16.msra.mxu0 0
    %928 = vmatprep.subr.bf16.mxu0 0
    %929 = vmatpush1.bf16.msra.mxu0 0
    %930 = vmatprep.subr.bf16.mxu0 0
    %931 = vmatpush1.bf16.msra.mxu0 0
    %932 = vmatprep.subr.bf16.mxu0 0
    %933 = vmatpush1.bf16.msra.mxu0 0
    %934 = vmatprep.subr.bf16.mxu0 0
    %935 = vmatpush1.bf16.msra.mxu0 0
    %936 = vmatprep.mubr.bf16.mxu0 0
    %937 = vmatmul.mubr.bf16.gmra.mrb[0].mxu0 %v831
    %v938 = vpop.f32.mrb[0].mxu0
    %v939 = vadd.f32 %v854, %v938
    %v940 = vpop.f32.mrb[0].mxu0
    %v941 = vpop.f32.mrb[0].mxu0
    %v942 = vadd.f32 %v854, %v941
    %v943 = vpop.f32.mrb[0].mxu0
    %944 = vmatprep.mubr.bf16.mxu0 0
    %945 = vmatmul.mubr.bf16.gmra.mrb[0].mxu0 %v832
    %v946 = vpop.f32.mrb[0].mxu0
    %v947 = vadd.f32 %v854, %v946
    %v948 = vpop.f32.mrb[0].mxu0
    %v949 = vpop.f32.mrb[0].mxu0
    %v950 = vpop.f32.mrb[0].mxu0
    %951 = vdwg.mxu0
    %v952 = vmax.f32 %v939, 0.0
    %v953 = vmax.f32 %v942, 0.0
    %v954 = vmax.f32 %v947, 0.0
    %v955 = vpack.c.bf16 %v953, %v952
    %v956 = vpack.c.bf16 %v954, %v954
    %v957 = vld [vmem:[%s7] sm:$0xf]
    %v958 = vld [vmem:[%s7 + $0x4] sm:$0xf]
    %v959 = vld [vmem:[%s7 + $0x8] sm:$0xf]
    %v960 = vld [vmem:[%s7 + $0xc] sm:$0xf]
    %v961 = vld [vmem:[%s7 + $0x10] sm:$0xf]
    %v962 = vld [vmem:[%s7 + $0x14] sm:$0xf]
    %v963 = vld [vmem:[%s7 + $0x18] sm:$0xf]
    %v964 = vld [vmem:[%s7 + $0x1c] sm:$0xf]
    %v965 = vld [vmem:[%s7 + $0x20] sm:$0xf]
    %v966 = vld [vmem:[%s7 + $0x24] sm:$0xf]
    %v967 = vld [vmem:[%s7 + $0x28] sm:$0xf]
    %v968 = vld [vmem:[%s7 + $0x2c] sm:$0xf]
    %v969 = vld [vmem:[%s7 + $0x30] sm:$0xf]
    %v970 = vld [vmem:[%s7 + $0x34] sm:$0xf]
    %v971 = vld [vmem:[%s7 + $0x38] sm:$0xf]
    %v972 = vld [vmem:[%s7 + $0x3c] sm:$0xf]
    %v973 = vld [vmem:[%s8] sm:$0x1]
    %v975 = vlaneseq
    %v976 = vshrl.u32 %v975, 7
    %v977 = vsub.s32 0, %v976
    %v978 = vrot.slane %v973, %v977
    %v996 = vunpack.c.l.b16 %v957
    %v997 = vunpack.c.l.b16 %v958
    %v998 = vunpack.c.l.b16 %v959
    %v999 = vunpack.c.l.b16 %v960
    %v1000 = vunpack.c.l.b16 %v961
    %v1001 = vunpack.c.l.b16 %v962
    %v1002 = vunpack.c.l.b16 %v963
    %v1003 = vunpack.c.l.b16 %v964
    %v1004 = vunpack.c.l.b16 %v965
    %v1005 = vunpack.c.l.b16 %v966
    %v1006 = vunpack.c.l.b16 %v967
    %v1007 = vunpack.c.l.b16 %v968
    %v1008 = vunpack.c.l.b16 %v969
    %v1009 = vunpack.c.l.b16 %v970
    %v1010 = vunpack.c.l.b16 %v971
    %v1011 = vunpack.c.l.b16 %v972
    %v1012 = vpack.c.b16 %v997, %v996
    %v1013 = vpack.c.b16 %v999, %v998
    %v1014 = vpack.c.b16 %v1001, %v1000
    %v1015 = vpack.c.b16 %v1003, %v1002
    %v1016 = vpack.c.b16 %v1005, %v1004
    %v1017 = vpack.c.b16 %v1007, %v1006
    %v1018 = vpack.c.b16 %v1009, %v1008
    %v1019 = vpack.c.b16 %v1011, %v1010
    %1028 = vmatprep.subr.bf16.mxu0 0
    %1029 = vmatpush1.bf16.msra.mxu0 %v1012
    %1030 = vmatprep.subr.bf16.mxu0 0
    %1031 = vmatpush1.bf16.msra.mxu0 %v1013
    %1032 = vmatprep.subr.bf16.mxu0 0
    %1033 = vmatpush1.bf16.msra.mxu0 %v1014
    %1034 = vmatprep.subr.bf16.mxu0 0
    %1035 = vmatpush1.bf16.msra.mxu0 %v1015
    %1036 = vmatprep.subr.bf16.mxu0 0
    %1037 = vmatpush1.bf16.msra.mxu0 %v1016
    %1038 = vmatprep.subr.bf16.mxu0 0
    %1039 = vmatpush1.bf16.msra.mxu0 %v1017
    %1040 = vmatprep.subr.bf16.mxu0 0
    %1041 = vmatpush1.bf16.msra.mxu0 %v1018
    %1042 = vmatprep.subr.bf16.mxu0 0
    %1043 = vmatpush1.bf16.msra.mxu0 %v1019
    %1044 = vmatprep.subr.bf16.mxu0 0
    %1045 = vmatpush1.bf16.msra.mxu0 0
    %1046 = vmatprep.subr.bf16.mxu0 0
    %1047 = vmatpush1.bf16.msra.mxu0 0
    %1048 = vmatprep.subr.bf16.mxu0 0
    %1049 = vmatpush1.bf16.msra.mxu0 0
    %1050 = vmatprep.subr.bf16.mxu0 0
    %1051 = vmatpush1.bf16.msra.mxu0 0
    %1052 = vmatprep.subr.bf16.mxu0 0
    %1053 = vmatpush1.bf16.msra.mxu0 0
    %1054 = vmatprep.subr.bf16.mxu0 0
    %1055 = vmatpush1.bf16.msra.mxu0 0
    %1056 = vmatprep.subr.bf16.mxu0 0
    %1057 = vmatpush1.bf16.msra.mxu0 0
    %1058 = vmatprep.subr.bf16.mxu0 0
    %1059 = vmatpush1.bf16.msra.mxu0 0
    %1060 = vmatprep.mubr.bf16.mxu0 0
    %1061 = vmatmul.mubr.bf16.gmra.mrb[0].mxu0 %v955
    %v1062 = vpop.f32.mrb[0].mxu0
    %v1063 = vadd.f32 %v978, %v1062
    %v1064 = vpop.f32.mrb[0].mxu0
    %v1065 = vpop.f32.mrb[0].mxu0
    %v1066 = vadd.f32 %v978, %v1065
    %v1067 = vpop.f32.mrb[0].mxu0
    %1068 = vmatprep.mubr.bf16.mxu0 0
    %1069 = vmatmul.mubr.bf16.gmra.mrb[0].mxu0 %v956
    %v1070 = vpop.f32.mrb[0].mxu0
    %v1071 = vadd.f32 %v978, %v1070
    %v1072 = vpop.f32.mrb[0].mxu0
    %v1073 = vpop.f32.mrb[0].mxu0
    %v1074 = vpop.f32.mrb[0].mxu0
    %1075 = vdwg.mxu0
    %1076 = vst.msk [vmem:[%s9] sm:$0xff] %vm508, %v1063
    %1077 = vst.msk [vmem:[%s9 + $0x8] sm:$0xff] %vm508, %v1066
    %vm1078 = vcmask 125952
    %1079 = vst.msk [vmem:[%s9 + $0x10] sm:$0xf] %vm1078, %v1071
    // Predicated region
    $region50: #{_mlp_forward.1} parent=1 // pred_check
      _
    $region51: #{_mlp_forward.1} parent=1 // pred_check_branch
      %1081 = sbr.rel (0) target = $region53
    $region52: #{_mlp_forward.1} parent=1 // pred_region
      _
    $region53: #{_mlp_forward.1} parent=1 // pred_fallthru
      _
    // Predicated region
    $region54: #{_mlp_forward.1} parent=1 // pred_check
      _
    $region55: #{_mlp_forward.1} parent=1 // pred_check_branch
      %1083 = sbr.rel (0) target = $region57
    $region56: #{_mlp_forward.1} parent=1 // pred_region
      _
    $region57: #{_mlp_forward.1} parent=1 // pred_fallthru
      _
    %1084 = vsyncpa [#allocation3], 1
    %1085 = vsyncpa [#allocation5], 1

</llo_original>
